<compile_context>
chip_gen: v5e
topology: v5e:2x2
jax: 0.10.0
libtpu: 0.0.40
codegen_flags: <defaults>
</compile_context>

<pallas_src>
import functools

import jax
import jax.numpy as jnp
from jax.experimental import pallas as pl
from jax.experimental.pallas import tpu as pltpu


# ---------------------------------------------------------------------------
# Kernel
# ---------------------------------------------------------------------------
def _critic_kernel(s_ref, a_ref, w1s_ref, w1a_ref, b1_ref, w2_ref, b2_ref,
                   w3_ref, b3_ref, q_ref):
    """One batch tile (TM rows) of the 3-layer MLP. Weights are VMEM-resident."""
    # Layer 1: split-weight matmul replaces the concat([state, action]).
    s = s_ref[...].astype(jnp.bfloat16)
    a = a_ref[...].astype(jnp.bfloat16)
    h1 = (jnp.dot(s, w1s_ref[...], preferred_element_type=jnp.float32) +
          jnp.dot(a, w1a_ref[...], preferred_element_type=jnp.float32))
    h1 = jnp.maximum(h1 + b1_ref[...], 0.0)                 # f32 bias + ReLU

    # Layer 2: dominant matmul (bf16 operands, f32 accumulate).
    h2 = jnp.dot(h1.astype(jnp.bfloat16), w2_ref[...],
                 preferred_element_type=jnp.float32)
    h2 = jnp.maximum(h2 + b2_ref[...], 0.0)                 # f32 bias + ReLU

    # Layer 3 (output width 1): VPU multiply + XLU lane reduction instead of a
    # nearly-empty MXU matmul.
    q = jnp.sum(h2 * w3_ref[...], axis=-1, keepdims=True) + b3_ref[...]
    q_ref[...] = q.astype(q_ref.dtype)


# ---------------------------------------------------------------------------
# Wrapper
# ---------------------------------------------------------------------------
def _round_up(x, m):
    return (x + m - 1) // m * m


def prepare_critic_params(params, state_dim):
    """Pad hidden dims to multiples of 128, split w1, cast matmul weights bf16."""
    w1, b1 = params["w1"], params["b1"]          # (din, h1), (1, h1)
    w2, b2 = params["w2"], params["b2"]          # (h1, h2), (1, h2)
    w3, b3 = params["w3"], params["b3"]          # (h2, 1),  (1, 1)
    din, h1 = w1.shape
    h2 = w2.shape[1]
    h1p = _round_up(h1, 128)
    h2p = _round_up(h2, 128)

    def pad2(x, rows, cols):
        return jnp.pad(x, ((0, rows - x.shape[0]), (0, cols - x.shape[1])))

    w1p = pad2(w1, din, h1p)
    return {
        "w1s": w1p[:state_dim].astype(jnp.bfloat16),          # (state_dim, H1p)
        "w1a": w1p[state_dim:].astype(jnp.bfloat16),           # (action_dim, H1p)
        "b1": pad2(b1, 1, h1p).astype(jnp.float32),            # (1, H1p)
        "w2": pad2(w2, h1p, h2p).astype(jnp.bfloat16),         # (H1p, H2p)
        "b2": pad2(b2, 1, h2p).astype(jnp.float32),            # (1, H2p)
        "w3": pad2(w3, h2p, 1).reshape(1, h2p).astype(jnp.float32),  # (1, H2p)
        "b3": b3.astype(jnp.float32),                          # (1, 1)
    }


@functools.partial(jax.jit, static_argnames=("block_rows",))
def critic_forward(state, action, prep, block_rows=None):
    """Pallas-backed Critic.forward(state, action) on prepared params."""
    # --- glue: flatten leading dims (torch.cat over dim 1 or 2 semantics) ---
    if state.ndim == 3:
        lead = state.shape[:2]
        s2d = state.reshape(-1, state.shape[-1])
        a2d = action.reshape(-1, action.shape[-1])
    else:
        lead = (state.shape[0],)
        s2d, a2d = state, action

    w1s, w1a, b1 = prep["w1s"], prep["w1a"], prep["b1"]
    w2, b2, w3, b3 = prep["w2"], prep["b2"], prep["w3"], prep["b3"]

    B = s2d.shape[0]
    sd, ad = w1s.shape[0], w1a.shape[0]
    H1p, H2p = w1s.shape[1], w2.shape[1]

    # Batch tile: big enough to amortize ~0.35 us/step, small enough that the
    # per-step activations (TM*(H1p+H2p)*~6 B) stay far under v7x's 64 MiB VMEM.
    if block_rows is None:
        TM = B if B <= 1024 else 1024
    else:
        TM = min(block_rows, B)
    grid = (pl.cdiv(B, TM),)

    # Advisory cost for XLA's scheduler.
    flops = 2 * B * ((sd + ad) * H1p + H1p * H2p + H2p)
    weight_bytes = ((w1s.size + w1a.size + w2.size) * 2 +
                    (b1.size + b2.size + w3.size + b3.size) * 4)
    cost = pl.CostEstimate(flops=int(flops), transcendentals=0,
                           bytes_accessed=int(B * (sd + ad + 1) * 4 +
                                              weight_bytes))

    # VMEM budget: 2x resident weights (double-buffer worst case) +
    # double-buffered I/O tiles + f32/bf16 activation intermediates + slack.
    act_bytes = TM * (H1p + H2p) * 6 + 2 * TM * (sd + ad + 1) * 4
    vmem_limit = int(min(48 << 20,
                         max(16 << 20,
                             2 * weight_bytes + act_bytes + (8 << 20))))

    q2d = pl.pallas_call(
        _critic_kernel,
        out_shape=jax.ShapeDtypeStruct((B, 1), jnp.float32),
        grid=grid,
        in_specs=[
            pl.BlockSpec((TM, sd), lambda i: (i, 0)),      # state tile
            pl.BlockSpec((TM, ad), lambda i: (i, 0)),      # action tile
            pl.BlockSpec((sd, H1p), lambda i: (0, 0)),     # w1_state (resident)
            pl.BlockSpec((ad, H1p), lambda i: (0, 0)),     # w1_action (resident)
            pl.BlockSpec((1, H1p), lambda i: (0, 0)),      # b1
            pl.BlockSpec((H1p, H2p), lambda i: (0, 0)),    # w2 (resident)
            pl.BlockSpec((1, H2p), lambda i: (0, 0)),      # b2
            pl.BlockSpec((1, H2p), lambda i: (0, 0)),      # w3 row
            pl.BlockSpec((1, 1), lambda i: (0, 0)),        # b3
        ],
        out_specs=pl.BlockSpec((TM, 1), lambda i: (i, 0)),
        compiler_params=pltpu.CompilerParams(
            dimension_semantics=("parallel",),
            vmem_limit_bytes=vmem_limit),
        cost_estimate=cost,
    )(s2d, a2d, w1s, w1a, b1, w2, b2, w3, b3)

    return q2d.reshape(*lead, 1)


# ---------------------------------------------------------------------------
# Init + pure-JAX reference
# ---------------------------------------------------------------------------
def init_critic_params(key, state_dim, action_dim, hidden_sizes=(400, 300)):
    """Deterministic synthetic init (PyTorch-Linear-style uniform fan-in)."""
    din = state_dim + action_dim
    h1, h2 = hidden_sizes
    ks = jax.random.split(key, 6)

    def lin(kw, kb, fan_in, fan_out):
        bound = 1.0 / jnp.sqrt(fan_in)
        # stored already transposed: (in, out)
        w = jax.random.uniform(kw, (fan_in, fan_out), jnp.float32, -bound, bound)
        b = jax.random.uniform(kb, (1, fan_out), jnp.float32, -bound, bound)
        return w, b

    w1, b1 = lin(ks[0], ks[1], din, h1)
    w2, b2 = lin(ks[2], ks[3], h1, h2)
    w3, b3 = lin(ks[4], ks[5], h2, 1)
    return {"w1": w1, "b1": b1, "w2": w2, "b2": b2, "w3": w3, "b3": b3}


def _reference_forward(state, action, p):
    sa = jnp.concatenate([state, action], axis=-1)
    q = jnp.maximum(sa @ p["w1"] + p["b1"], 0.0)
    q = jnp.maximum(q @ p["w2"] + p["b2"], 0.0)
    return q @ p["w3"] + p["b3"]


# ---------------------------------------------------------------------------
# Self-test
# ---------------------------------------------------------------------------
if __name__ == "__main__":
    key = jax.random.PRNGKey(0)
    k_s, k_a, k_p, k_s3, k_a3 = jax.random.split(key, 5)

    STATE_DIM, ACTION_DIM = 12, 4
    HIDDEN = (400, 300)  # module defaults

    params = init_critic_params(k_p, STATE_DIM, ACTION_DIM, HIDDEN)
    prep = prepare_critic_params(params, STATE_DIM)

    # 2-D case (single batch tile).
    B = 8
    state = jax.random.normal(k_s, (B, STATE_DIM), jnp.float32)
    action = jax.random.normal(k_a, (B, ACTION_DIM), jnp.float32)
    q = jax.block_until_ready(critic_forward(state, action, prep))
    q_ref = _reference_forward(state, action, params)
    assert q.shape == (B, 1), q.shape
    # bf16 matmul operands (f32 accumulate) -> looser tolerance than pure f32.
    assert jnp.allclose(q, q_ref, atol=5e-2, rtol=5e-2), (
        "2-D mismatch vs. pure-JAX reference")

    # 3-D case exercising the batch grid (16 rows, 8-row tiles -> 2 grid steps
    # with weights staying VMEM-resident across steps).
    state3 = jax.random.normal(k_s3, (4, 4, STATE_DIM), jnp.float32)
    action3 = jax.random.normal(k_a3, (4, 4, ACTION_DIM), jnp.float32)
    q3 = jax.block_until_ready(
        critic_forward(state3, action3, prep, block_rows=8))
    q3_ref = _reference_forward(state3, action3, params)
    assert q3.shape == (4, 4, 1), q3.shape
    assert jnp.allclose(q3, q3_ref, atol=5e-2, rtol=5e-2), (
        "3-D mismatch vs. pure-JAX reference")

    print("KERNEL_OK")
</pallas_src>

<mosaic_0001>
module attributes {stable_mosaic.version = 11 : i64} {
  func.func @_critic_kernel(%arg0: i32, %arg1: memref<8x12xf32, #tpu.memory_space<vmem>>, %arg2: memref<8x4xf32, #tpu.memory_space<vmem>>, %arg3: memref<12x512xbf16, #tpu.memory_space<vmem>>, %arg4: memref<4x512xbf16, #tpu.memory_space<vmem>>, %arg5: memref<1x512xf32, #tpu.memory_space<vmem>>, %arg6: memref<512x384xbf16, #tpu.memory_space<vmem>>, %arg7: memref<1x384xf32, #tpu.memory_space<vmem>>, %arg8: memref<1x384xf32, #tpu.memory_space<vmem>>, %arg9: memref<1x1xf32, #tpu.memory_space<vmem>>, %arg10: memref<8x1xf32, #tpu.memory_space<vmem>>) attributes {dimension_semantics = [#tpu.dimension_semantics<parallel>], iteration_bounds = array<i64: 1>, scalar_prefetch = 0 : i64, scratch_operands = 0 : i64, tpu.core_type = #tpu.core_type<tc>, window_params = [{transform_indices = @transform_0, window_bounds = array<i64: 8, 12>}, {transform_indices = @transform_1, window_bounds = array<i64: 8, 4>}, {pipeline_mode = #tpu.pipeline_mode<synchronous>, transform_indices = @transform_2, window_bounds = array<i64: 12, 512>}, {pipeline_mode = #tpu.pipeline_mode<synchronous>, transform_indices = @transform_3, window_bounds = array<i64: 4, 512>}, {pipeline_mode = #tpu.pipeline_mode<synchronous>, transform_indices = @transform_4, window_bounds = array<i64: 1, 512>}, {pipeline_mode = #tpu.pipeline_mode<synchronous>, transform_indices = @transform_5, window_bounds = array<i64: 512, 384>}, {pipeline_mode = #tpu.pipeline_mode<synchronous>, transform_indices = @transform_6, window_bounds = array<i64: 1, 384>}, {pipeline_mode = #tpu.pipeline_mode<synchronous>, transform_indices = @transform_7, window_bounds = array<i64: 1, 384>}, {pipeline_mode = #tpu.pipeline_mode<synchronous>, transform_indices = @transform_8, window_bounds = array<i64: 1, 1>}, {transform_indices = @transform_9, window_bounds = array<i64: 8, 1>}]} {
    %c0 = arith.constant 0 : index
    %c0_0 = arith.constant 0 : index
    %0 = vector.load %arg1[%c0, %c0_0] : memref<8x12xf32, #tpu.memory_space<vmem>>, vector<8x12xf32>
    %1 = arith.truncf %0 : vector<8x12xf32> to vector<8x12xbf16>
    %c0_1 = arith.constant 0 : index
    %c0_2 = arith.constant 0 : index
    %2 = vector.load %arg2[%c0_1, %c0_2] : memref<8x4xf32, #tpu.memory_space<vmem>>, vector<8x4xf32>
    %3 = arith.truncf %2 : vector<8x4xf32> to vector<8x4xbf16>
    %c0_3 = arith.constant 0 : index
    %c0_4 = arith.constant 0 : index
    %4 = vector.load %arg3[%c0_3, %c0_4] : memref<12x512xbf16, #tpu.memory_space<vmem>>, vector<12x512xbf16>
    %cst = arith.constant dense<0.000000e+00> : vector<8x512xf32>
    %5 = tpu.matmul %1, %4, %cst {dimension_numbers = #tpu.dot_dimension_numbers<[1], [0], [0], [1], [0, 0, 1, 1], [], []>} : vector<8x12xbf16>, vector<12x512xbf16>, vector<8x512xf32> -> vector<8x512xf32>
    %c0_5 = arith.constant 0 : index
    %c0_6 = arith.constant 0 : index
    %6 = vector.load %arg4[%c0_5, %c0_6] : memref<4x512xbf16, #tpu.memory_space<vmem>>, vector<4x512xbf16>
    %cst_7 = arith.constant dense<0.000000e+00> : vector<8x512xf32>
    %7 = tpu.matmul %3, %6, %cst_7 {dimension_numbers = #tpu.dot_dimension_numbers<[1], [0], [0], [1], [0, 0, 1, 1], [], []>} : vector<8x4xbf16>, vector<4x512xbf16>, vector<8x512xf32> -> vector<8x512xf32>
    %8 = arith.addf %5, %7 : vector<8x512xf32>
    %c0_8 = arith.constant 0 : index
    %c0_9 = arith.constant 0 : index
    %9 = vector.load %arg5[%c0_8, %c0_9] : memref<1x512xf32, #tpu.memory_space<vmem>>, vector<1x512xf32>
    %10 = vector.broadcast %9 : vector<1x512xf32> to vector<8x512xf32>
    %11 = arith.addf %8, %10 : vector<8x512xf32>
    %cst_10 = arith.constant 0.000000e+00 : f32
    %12 = vector.broadcast %cst_10 : f32 to vector<8x512xf32>
    %13 = arith.maximumf %11, %12 : vector<8x512xf32>
    %14 = arith.truncf %13 : vector<8x512xf32> to vector<8x512xbf16>
    %c0_11 = arith.constant 0 : index
    %c0_12 = arith.constant 0 : index
    %15 = vector.load %arg6[%c0_11, %c0_12] : memref<512x384xbf16, #tpu.memory_space<vmem>>, vector<512x384xbf16>
    %cst_13 = arith.constant dense<0.000000e+00> : vector<8x384xf32>
    %16 = tpu.matmul %14, %15, %cst_13 {dimension_numbers = #tpu.dot_dimension_numbers<[1], [0], [0], [1], [0, 0, 1, 1], [], []>} : vector<8x512xbf16>, vector<512x384xbf16>, vector<8x384xf32> -> vector<8x384xf32>
    %c0_14 = arith.constant 0 : index
    %c0_15 = arith.constant 0 : index
    %17 = vector.load %arg7[%c0_14, %c0_15] : memref<1x384xf32, #tpu.memory_space<vmem>>, vector<1x384xf32>
    %18 = vector.broadcast %17 : vector<1x384xf32> to vector<8x384xf32>
    %19 = arith.addf %16, %18 : vector<8x384xf32>
    %cst_16 = arith.constant 0.000000e+00 : f32
    %20 = vector.broadcast %cst_16 : f32 to vector<8x384xf32>
    %21 = arith.maximumf %19, %20 : vector<8x384xf32>
    %c0_17 = arith.constant 0 : index
    %c0_18 = arith.constant 0 : index
    %22 = vector.load %arg8[%c0_17, %c0_18] : memref<1x384xf32, #tpu.memory_space<vmem>>, vector<1x384xf32>
    %23 = vector.broadcast %22 : vector<1x384xf32> to vector<8x384xf32>
    %24 = arith.mulf %21, %23 : vector<8x384xf32>
    %cst_19 = arith.constant dense<0.000000e+00> : vector<8xf32>
    %25 = vector.multi_reduction <add>, %24, %cst_19 [1] : vector<8x384xf32> to vector<8xf32>
    %26 = vector.shape_cast %25 : vector<8xf32> to vector<8x1xf32>
    %c0_20 = arith.constant 0 : index
    %c0_21 = arith.constant 0 : index
    %27 = vector.load %arg9[%c0_20, %c0_21] : memref<1x1xf32, #tpu.memory_space<vmem>>, vector<1x1xf32>
    %28 = vector.broadcast %27 : vector<1x1xf32> to vector<8x1xf32>
    %29 = arith.addf %26, %28 : vector<8x1xf32>
    %c0_22 = arith.constant 0 : index
    %c0_23 = arith.constant 0 : index
    %30 = vector.load %arg10[%c0_22, %c0_23] : memref<8x1xf32, #tpu.memory_space<vmem>>, vector<8x1xf32>
    tpu.vector_store %arg10[%c0_22, %c0_23], %29 {strides = array<i32>} : memref<8x1xf32, #tpu.memory_space<vmem>>, vector<8x1xf32>,
    return
  }
  func.func @transform_0(%arg0: i32) -> (i32, i32) {
    %c0_i32 = arith.constant 0 : i32
    %c0_i32_0 = arith.constant 0 : i32
    return %arg0, %c0_i32 : i32, i32
  }
  func.func @transform_1(%arg0: i32) -> (i32, i32) {
    %c0_i32 = arith.constant 0 : i32
    %c0_i32_0 = arith.constant 0 : i32
    return %arg0, %c0_i32 : i32, i32
  }
  func.func @transform_2(%arg0: i32) -> (i32, i32) {
    %c0_i32 = arith.constant 0 : i32
    %c0_i32_0 = arith.constant 0 : i32
    %c0_i32_1 = arith.constant 0 : i32
    return %c0_i32, %c0_i32_0 : i32, i32
  }
  func.func @transform_3(%arg0: i32) -> (i32, i32) {
    %c0_i32 = arith.constant 0 : i32
    %c0_i32_0 = arith.constant 0 : i32
    %c0_i32_1 = arith.constant 0 : i32
    return %c0_i32, %c0_i32_0 : i32, i32
  }
  func.func @transform_4(%arg0: i32) -> (i32, i32) {
    %c0_i32 = arith.constant 0 : i32
    %c0_i32_0 = arith.constant 0 : i32
    %c0_i32_1 = arith.constant 0 : i32
    return %c0_i32, %c0_i32_0 : i32, i32
  }
  func.func @transform_5(%arg0: i32) -> (i32, i32) {
    %c0_i32 = arith.constant 0 : i32
    %c0_i32_0 = arith.constant 0 : i32
    %c0_i32_1 = arith.constant 0 : i32
    return %c0_i32, %c0_i32_0 : i32, i32
  }
  func.func @transform_6(%arg0: i32) -> (i32, i32) {
    %c0_i32 = arith.constant 0 : i32
    %c0_i32_0 = arith.constant 0 : i32
    %c0_i32_1 = arith.constant 0 : i32
    return %c0_i32, %c0_i32_0 : i32, i32
  }
  func.func @transform_7(%arg0: i32) -> (i32, i32) {
    %c0_i32 = arith.constant 0 : i32
    %c0_i32_0 = arith.constant 0 : i32
    %c0_i32_1 = arith.constant 0 : i32
    return %c0_i32, %c0_i32_0 : i32, i32
  }
  func.func @transform_8(%arg0: i32) -> (i32, i32) {
    %c0_i32 = arith.constant 0 : i32
    %c0_i32_0 = arith.constant 0 : i32
    %c0_i32_1 = arith.constant 0 : i32
    return %c0_i32, %c0_i32_0 : i32, i32
  }
  func.func @transform_9(%arg0: i32) -> (i32, i32) {
    %c0_i32 = arith.constant 0 : i32
    %c0_i32_0 = arith.constant 0 : i32
    return %arg0, %c0_i32 : i32, i32
  }
}

</mosaic_0001>

<llo_original>
// kernel: critic_forward.1
$region0: #{critic_forward.1}
  #allocation0 [shape = 'u32[]', space=smem, size = 0x4, offset = 0x4, fixed_abs, tag = 'smem constant byte address 0x4 - core index']
  #allocation1 [shape = 'u32[72,128]{1,0:T(1,128)}', space=vmem, size = 0x9000, scoped, tag = 'internal scratch']
  #allocation2 [shape = 'f32[1,1]{1,0:T(1,128)S(1)}', space=vmem, size = 0x200, scoped, tag = 'scoped memory for critic_forward.1']
  %s0 = inlined_call_operand.vmem [shape: f32[8,12], index: 0, kind: input, shape index: {}]
  %s1 = inlined_call_operand.vmem [shape: f32[8,4], index: 1, kind: input, shape index: {}]
  %s2 = inlined_call_operand.hbm [shape: bf16[12,512], index: 2, kind: input, shape index: {}]
  %s3 = inlined_call_operand.vmem [shape: bf16[4,512], index: 3, kind: input, shape index: {}]
  %s4 = inlined_call_operand.hbm [shape: f32[1,512], index: 4, kind: input, shape index: {}]
  %s5 = inlined_call_operand.hbm [shape: bf16[512,384], index: 5, kind: input, shape index: {}]
  %s6 = inlined_call_operand.hbm [shape: f32[1,384], index: 6, kind: input, shape index: {}]
  %s7 = inlined_call_operand.vmem [shape: f32[1,384], index: 7, kind: input, shape index: {}]
  %s8 = inlined_call_operand.<no memory space> [shape: f32[1,1], index: 8, kind: input, shape index: {}]
  %s9 = inlined_call_operand.vmem [shape: f32[8,1], index: 9, kind: output, shape index: {}]
  %s10 = sld [smem:[#allocation0]]
  $region62: #{critic_forward.1} parent=0
    _
  %s12 = ssub.s32 1, %s10
  %s13 = scalar_select 0, %s12, %s10
  %v14 = vstv %s8
  %15 = vst [vmem:[#allocation2] sm:$0x1] %v14
  $region1: #{critic_forward.1} parent=0
    #allocation3 [shape = 'u8[16384]{0}', space=vmem, size = 0x4000, scoped, tag = 'input window, operand 2, single buffered']
    #allocation4 [shape = 's32[1]{0}', space=sflag, size = 0x4, scoped, tag = 'scoped memory for critic_forward.1']
    #allocation5 [shape = 'u8[2048]{0}', space=vmem, size = 0x800, scoped, tag = 'input window, operand 4, single buffered']
    #allocation6 [shape = 's32[1]{0}', space=sflag, size = 0x4, scoped, tag = 'scoped memory for critic_forward.1']
    #allocation7 [shape = 'u8[393216]{0}', space=vmem, size = 0x60000, scoped, tag = 'input window, operand 5, single buffered']
    #allocation8 [shape = 'u8[1536]{0}', space=vmem, size = 0x800, scoped, tag = 'input window, operand 6, single buffered']
    #allocation9 [shape = 's32[1]{0}', space=sflag, size = 0x4, scoped, tag = 'scoped memory for critic_forward.1']
    %16 = vsyncpa [#allocation4], 0
    %17 = vsyncpa [#allocation6], 0
    %18 = vsyncpa [#allocation9], 0
    // Predicated region
    $region2: #{critic_forward.1} parent=1 // pred_check
      _
    $region3: #{critic_forward.1} parent=1 // pred_check_branch
      %20 = sbr.rel (0) target = $region5
    $region4: #{critic_forward.1} parent=1 // pred_region
      _
    $region5: #{critic_forward.1} parent=1 // pred_fallthru
      _
    // Predicated region
    $region6: #{critic_forward.1} parent=1 // pred_check
      _
    $region7: #{critic_forward.1} parent=1 // pred_check_branch
      %22 = sbr.rel (0) target = $region9
    $region8: #{critic_forward.1} parent=1 // pred_region
      _
    $region9: #{critic_forward.1} parent=1 // pred_fallthru
      _
    // Predicated region
    $region10: #{critic_forward.1} parent=1 // pred_check
      _
    $region11: #{critic_forward.1} parent=1 // pred_check_branch
      %24 = sbr.rel (0) target = $region13
    $region12: #{critic_forward.1} parent=1 // pred_region
      %26 = vsyncadd [#allocation4], 0
      %s27 = sshll.u32 %s2, 4
      %s28 = int_to_ptr.hbm [resolvable:$true] %s27
      %s29 = sshll.u32 [#allocation3], 4
      %s30 = int_to_ptr.vmem [resolvable:$true] %s29
      %35 = dma.hbm_to_vmem [thread:$0]  %s28, 512, %s30, [#allocation4], 256, 256, 16
    $region13: #{critic_forward.1} parent=1 // pred_fallthru
      _
    // Predicated region
    $region14: #{critic_forward.1} parent=1 // pred_check
      _
    $region15: #{critic_forward.1} parent=1 // pred_check_branch
      %37 = sbr.rel (0) target = $region17
    $region16: #{critic_forward.1} parent=1 // pred_region
      _
    $region17: #{critic_forward.1} parent=1 // pred_fallthru
      _
    // Predicated region
    $region18: #{critic_forward.1} parent=1 // pred_check
      _
    $region19: #{critic_forward.1} parent=1 // pred_check_branch
      %39 = sbr.rel (0) target = $region21
    $region20: #{critic_forward.1} parent=1 // pred_region
      %41 = vsyncadd [#allocation6], 0
      %s43 = sshll.u32 %s4, 4
      %s44 = int_to_ptr.hbm [resolvable:$true] %s43
      %s45 = sshll.u32 [#allocation5], 4
      %s46 = int_to_ptr.vmem [resolvable:$true] %s45
      %48 = dma.hbm_to_vmem [thread:$0]  %s44, 64, %s46, [#allocation6]
    $region21: #{critic_forward.1} parent=1 // pred_fallthru
      _
    // Predicated region
    $region22: #{critic_forward.1} parent=1 // pred_check
      _
    $region23: #{critic_forward.1} parent=1 // pred_check_branch
      %50 = sbr.rel (0) target = $region25
    $region24: #{critic_forward.1} parent=1 // pred_region
      %52 = vsyncadd [#allocation6], 0
      %s53 = sshll.u32 %s5, 4
      %s54 = int_to_ptr.hbm [resolvable:$true] %s53
      %s55 = sshll.u32 [#allocation7], 4
      %s56 = int_to_ptr.vmem [resolvable:$true] %s55
      %61 = dma.hbm_to_vmem [thread:$0]  %s54, 12288, %s56, [#allocation6], 192, 192, 12
    $region25: #{critic_forward.1} parent=1 // pred_fallthru
      _
    // Predicated region
    $region26: #{critic_forward.1} parent=1 // pred_check
      _
    $region27: #{critic_forward.1} parent=1 // pred_check_branch
      %63 = sbr.rel (0) target = $region29
    $region28: #{critic_forward.1} parent=1 // pred_region
      %65 = vsyncadd [#allocation9], 0
      %s67 = sshll.u32 %s6, 4
      %s68 = int_to_ptr.hbm [resolvable:$true] %s67
      %s69 = sshll.u32 [#allocation8], 4
      %s70 = int_to_ptr.vmem [resolvable:$true] %s69
      %72 = dma.hbm_to_vmem [thread:$0]  %s68, 48, %s70, [#allocation9]
    $region29: #{critic_forward.1} parent=1 // pred_fallthru
      _
    // Predicated region
    $region30: #{critic_forward.1} parent=1 // pred_check
      _
    $region31: #{critic_forward.1} parent=1 // pred_check_branch
      %74 = sbr.rel (0) target = $region33
    $region32: #{critic_forward.1} parent=1 // pred_region
      _
    $region33: #{critic_forward.1} parent=1 // pred_fallthru
      _
    // Predicated region
    $region34: #{critic_forward.1} parent=1 // pred_check
      _
    $region35: #{critic_forward.1} parent=1 // pred_check_branch
      %76 = sbr.rel (0) target = $region37
    $region36: #{critic_forward.1} parent=1 // pred_region
      _
    $region37: #{critic_forward.1} parent=1 // pred_fallthru
      _
    // Predicated region
    $region38: #{critic_forward.1} parent=1 // pred_check
      _
    $region39: #{critic_forward.1} parent=1 // pred_check_branch
      %78 = sbr.rel (0) target = $region41
    $region40: #{critic_forward.1} parent=1 // pred_region
      %80 = dma.done [#allocation4], 512
    $region41: #{critic_forward.1} parent=1 // pred_fallthru
      _
    // Predicated region
    $region42: #{critic_forward.1} parent=1 // pred_check
      _
    $region43: #{critic_forward.1} parent=1 // pred_check_branch
      %82 = sbr.rel (0) target = $region45
    $region44: #{critic_forward.1} parent=1 // pred_region
      %84 = dma.done [#allocation6], 64
    $region45: #{critic_forward.1} parent=1 // pred_fallthru
      _
    // Predicated region
    $region46: #{critic_forward.1} parent=1 // pred_check
      _
    $region47: #{critic_forward.1} parent=1 // pred_check_branch
      %86 = sbr.rel (0) target = $region49
    $region48: #{critic_forward.1} parent=1 // pred_region
      %88 = dma.done [#allocation6], 12288
    $region49: #{critic_forward.1} parent=1 // pred_fallthru
      _
    // Predicated region
    $region50: #{critic_forward.1} parent=1 // pred_check
      _
    $region51: #{critic_forward.1} parent=1 // pred_check_branch
      %90 = sbr.rel (0) target = $region53
    $region52: #{critic_forward.1} parent=1 // pred_region
      %92 = dma.done [#allocation9], 48
    $region53: #{critic_forward.1} parent=1 // pred_fallthru
      _
    %v94 = vld [vmem:[%s0] sm:$0xff]
    %v95 = vpack.c.bf16 %v94, %v94
    %v96 = vld [vmem:[%s1] sm:$0xff]
    %v97 = vpack.c.bf16 %v96, %v96
    %v98 = vld [vmem:[#allocation3] sm:$0xff]
    %v99 = vld [vmem:[#allocation3 + $0x8] sm:$0xff]
    %v100 = vld [vmem:[#allocation3 + $0x10] sm:$0x33]
    %v101 = vld [vmem:[#allocation3 + $0x18] sm:$0x33]
    %v102 = vld [vmem:[%s3] sm:$0xff]
    %104 = vst [vmem:[#allocation1] ss:$4 sm:$0xff] %v102
    %v105 = vld.sshfl [vmem:[#allocation1] sm:$0xff pattern:$0x73625140]
    %v106 = vld.sshfl [vmem:[#allocation1 + $0x8] sm:$0xff pattern:$0x73625140]
    %v107 = vld.sshfl [vmem:[#allocation1 + $0x10] sm:$0xff pattern:$0x73625140]
    %v108 = vld.sshfl [vmem:[#allocation1 + $0x18] sm:$0xff pattern:$0x73625140]
    %vm109 = vcmask 31744
    %v111 = vsel %vm109, %v97, 0
    %vm113 = vcmask 1041408
    %v114 = vsel %vm113, %v105, 0
    %v116 = vsel %vm113, %v106, 0
    %v118 = vsel %vm113, %v107, 0
    %v120 = vsel %vm113, %v108, 0
    %122 = vmatpush.bf16.msra.mxu0 0
    %123 = vmatpush.bf16.msra.mxu0 0
    %124 = vmatpush.bf16.msra.mxu0 0
    %125 = vmatpush.bf16.msra.mxu0 0
    %126 = vmatpush.bf16.msra.mxu0 0
    %127 = vmatpush.bf16.msra.mxu0 0
    %128 = vmatpush.bf16.msra.mxu0 0
    %129 = vmatpush.bf16.msra.mxu0 %v114
    %130 = vmatmul.bf16.gmra.mxu0 %v111
    %v131 = vpop.f32.mrf.mxu0
    %v132 = vadd.f32 0.0, %v131
    %v133 = vpop.f32.mrf.mxu0
    %134 = vdwg.mxu0
    %135 = vmatpush.bf16.msra.mxu0 0
    %136 = vmatpush.bf16.msra.mxu0 0
    %137 = vmatpush.bf16.msra.mxu0 0
    %138 = vmatpush.bf16.msra.mxu0 0
    %139 = vmatpush.bf16.msra.mxu0 0
    %140 = vmatpush.bf16.msra.mxu0 0
    %141 = vmatpush.bf16.msra.mxu0 0
    %142 = vmatpush.bf16.msra.mxu0 %v116
    %143 = vmatmul.bf16.gmra.mxu0 %v111
    %v144 = vpop.f32.mrf.mxu0
    %v145 = vadd.f32 0.0, %v144
    %v146 = vpop.f32.mrf.mxu0
    %147 = vdwg.mxu0
    %148 = vmatpush.bf16.msra.mxu0 0
    %149 = vmatpush.bf16.msra.mxu0 0
    %150 = vmatpush.bf16.msra.mxu0 0
    %151 = vmatpush.bf16.msra.mxu0 0
    %152 = vmatpush.bf16.msra.mxu0 0
    %153 = vmatpush.bf16.msra.mxu0 0
    %154 = vmatpush.bf16.msra.mxu0 0
    %155 = vmatpush.bf16.msra.mxu0 %v118
    %156 = vmatmul.bf16.gmra.mxu0 %v111
    %v157 = vpop.f32.mrf.mxu0
    %v158 = vadd.f32 0.0, %v157
    %v159 = vpop.f32.mrf.mxu0
    %160 = vdwg.mxu0
    %161 = vmatpush.bf16.msra.mxu0 0
    %162 = vmatpush.bf16.msra.mxu0 0
    %163 = vmatpush.bf16.msra.mxu0 0
    %164 = vmatpush.bf16.msra.mxu0 0
    %165 = vmatpush.bf16.msra.mxu0 0
    %166 = vmatpush.bf16.msra.mxu0 0
    %167 = vmatpush.bf16.msra.mxu0 0
    %168 = vmatpush.bf16.msra.mxu0 %v120
    %169 = vmatmul.bf16.gmra.mxu0 %v111
    %v170 = vpop.f32.mrf.mxu0
    %v171 = vadd.f32 0.0, %v170
    %v172 = vpop.f32.mrf.mxu0
    %173 = vdwg.mxu0
    %v178 = vunpack.c.l.b16 %v98
    %v179 = vunpack.c.h.b16 %v98
    %v180 = vunpack.c.l.b16 %v99
    %v181 = vunpack.c.h.b16 %v99
    %v182 = vunpack.c.l.b16 %v100
    %v183 = vunpack.c.h.b16 %v100
    %v184 = vunpack.c.l.b16 %v101
    %v185 = vunpack.c.h.b16 %v101
    %v186 = vpack.c.b16 %v182, %v178
    %v187 = vpack.c.b16 %v183, %v179
    %v188 = vpack.c.b16 %v184, %v180
    %v189 = vpack.c.b16 %v185, %v181
    %vm190 = vcmask 97280
    %v192 = vsel %vm190, %v95, 0
    %vm194 = vcmask 1045504
    %v196 = vsel %vm194, %v186, 0
    %v199 = vsel %vm194, %v187, 0
    %v202 = vsel %vm194, %v188, 0
    %v205 = vsel %vm194, %v189, 0
    %207 = vmatpush.bf16.msra.mxu0 0
    %208 = vmatpush.bf16.msra.mxu0 0
    %209 = vmatpush.bf16.msra.mxu0 0
    %210 = vmatpush.bf16.msra.mxu0 0
    %211 = vmatpush.bf16.msra.mxu0 0
    %212 = vmatpush.bf16.msra.mxu0 0
    %213 = vmatpush.bf16.msra.mxu0 0
    %214 = vmatpush.bf16.msra.mxu0 %v196
    %215 = vmatmul.bf16.gmra.mxu0 %v192
    %v216 = vpop.f32.mrf.mxu0
    %v217 = vadd.f32 %v132, %v216
    %v218 = vpop.f32.mrf.mxu0
    %219 = vdwg.mxu0
    %220 = vmatpush.bf16.msra.mxu0 0
    %221 = vmatpush.bf16.msra.mxu0 0
    %222 = vmatpush.bf16.msra.mxu0 0
    %223 = vmatpush.bf16.msra.mxu0 0
    %224 = vmatpush.bf16.msra.mxu0 0
    %225 = vmatpush.bf16.msra.mxu0 0
    %226 = vmatpush.bf16.msra.mxu0 0
    %227 = vmatpush.bf16.msra.mxu0 %v199
    %228 = vmatmul.bf16.gmra.mxu0 %v192
    %v229 = vpop.f32.mrf.mxu0
    %v230 = vadd.f32 %v145, %v229
    %v231 = vpop.f32.mrf.mxu0
    %232 = vdwg.mxu0
    %233 = vmatpush.bf16.msra.mxu0 0
    %234 = vmatpush.bf16.msra.mxu0 0
    %235 = vmatpush.bf16.msra.mxu0 0
    %236 = vmatpush.bf16.msra.mxu0 0
    %237 = vmatpush.bf16.msra.mxu0 0
    %238 = vmatpush.bf16.msra.mxu0 0
    %239 = vmatpush.bf16.msra.mxu0 0
    %240 = vmatpush.bf16.msra.mxu0 %v202
    %241 = vmatmul.bf16.gmra.mxu0 %v192
    %v242 = vpop.f32.mrf.mxu0
    %v243 = vadd.f32 %v158, %v242
    %v244 = vpop.f32.mrf.mxu0
    %245 = vdwg.mxu0
    %246 = vmatpush.bf16.msra.mxu0 0
    %247 = vmatpush.bf16.msra.mxu0 0
    %248 = vmatpush.bf16.msra.mxu0 0
    %249 = vmatpush.bf16.msra.mxu0 0
    %250 = vmatpush.bf16.msra.mxu0 0
    %251 = vmatpush.bf16.msra.mxu0 0
    %252 = vmatpush.bf16.msra.mxu0 0
    %253 = vmatpush.bf16.msra.mxu0 %v205
    %254 = vmatmul.bf16.gmra.mxu0 %v192
    %v255 = vpop.f32.mrf.mxu0
    %v256 = vadd.f32 %v171, %v255
    %v257 = vpop.f32.mrf.mxu0
    %258 = vdwg.mxu0
    %v259 = vld [vmem:[#allocation5] sm:$0xf]
    %v261 = vperm.slane %v259, 0
    %v262 = vperm.slane %v259, 1
    %v263 = vperm.slane %v259, 2
    %v264 = vperm.slane %v259, 3
    %v269 = vadd.f32 %v217, %v261
    %v270 = vadd.f32 %v230, %v262
    %v271 = vadd.f32 %v243, %v263
    %v272 = vadd.f32 %v256, %v264
    %v273 = vmax.f32 %v269, 0.0
    %v274 = vmax.f32 %v270, 0.0
    %v275 = vmax.f32 %v271, 0.0
    %v276 = vmax.f32 %v272, 0.0
    %v277 = vpack.c.bf16 %v273, %v273
    %v278 = vpack.c.bf16 %v274, %v274
    %v279 = vpack.c.bf16 %v275, %v275
    %v280 = vpack.c.bf16 %v276, %v276
    %v281 = vld [vmem:[#allocation7] sm:$0xff]
    %v282 = vld [vmem:[#allocation7 + $0x8] sm:$0xf]
    %v283 = vld [vmem:[#allocation7 + $0xc] sm:$0xff]
    %v284 = vld [vmem:[#allocation7 + $0x14] sm:$0xf]
    %v285 = vld [vmem:[#allocation7 + $0x18] sm:$0xff]
    %v286 = vld [vmem:[#allocation7 + $0x20] sm:$0xf]
    %v287 = vld [vmem:[#allocation7 + $0x24] sm:$0xff]
    %v288 = vld [vmem:[#allocation7 + $0x2c] sm:$0xf]
    %v289 = vld [vmem:[#allocation7 + $0x30] sm:$0xff]
    %v290 = vld [vmem:[#allocation7 + $0x38] sm:$0xf]
    %v291 = vld [vmem:[#allocation7 + $0x3c] sm:$0xff]
    %v292 = vld [vmem:[#allocation7 + $0x44] sm:$0xf]
    %v293 = vld [vmem:[#allocation7 + $0x48] sm:$0xff]
    %v294 = vld [vmem:[#allocation7 + $0x50] sm:$0xf]
    %v295 = vld [vmem:[#allocation7 + $0x54] sm:$0xff]
    %v296 = vld [vmem:[#allocation7 + $0x5c] sm:$0xf]
    %v297 = vld [vmem:[#allocation7 + $0x60] sm:$0xff]
    %v298 = vld [vmem:[#allocation7 + $0x68] sm:$0xf]
    %v299 = vld [vmem:[#allocation7 + $0x6c] sm:$0xff]
    %v300 = vld [vmem:[#allocation7 + $0x74] sm:$0xf]
    %v301 = vld [vmem:[#allocation7 + $0x78] sm:$0xff]
    %v302 = vld [vmem:[#allocation7 + $0x80] sm:$0xf]
    %v303 = vld [vmem:[#allocation7 + $0x84] sm:$0xff]
    %v304 = vld [vmem:[#allocation7 + $0x8c] sm:$0xf]
    %v305 = vld [vmem:[#allocation7 + $0x90] sm:$0xff]
    %v306 = vld [vmem:[#allocation7 + $0x98] sm:$0xf]
    %v307 = vld [vmem:[#allocation7 + $0x9c] sm:$0xff]
    %v308 = vld [vmem:[#allocation7 + $0xa4] sm:$0xf]
    %v309 = vld [vmem:[#allocation7 + $0xa8] sm:$0xff]
    %v310 = vld [vmem:[#allocation7 + $0xb0] sm:$0xf]
    %v311 = vld [vmem:[#allocation7 + $0xb4] sm:$0xff]
    %v312 = vld [vmem:[#allocation7 + $0xbc] sm:$0xf]
    %v313 = vld [vmem:[#allocation7 + $0xc0] sm:$0xff]
    %v314 = vld [vmem:[#allocation7 + $0xc8] sm:$0xf]
    %v315 = vld [vmem:[#allocation7 + $0xcc] sm:$0xff]
    %v316 = vld [vmem:[#allocation7 + $0xd4] sm:$0xf]
    %v317 = vld [vmem:[#allocation7 + $0xd8] sm:$0xff]
    %v318 = vld [vmem:[#allocation7 + $0xe0] sm:$0xf]
    %v319 = vld [vmem:[#allocation7 + $0xe4] sm:$0xff]
    %v320 = vld [vmem:[#allocation7 + $0xec] sm:$0xf]
    %v321 = vld [vmem:[#allocation7 + $0xf0] sm:$0xff]
    %v322 = vld [vmem:[#allocation7 + $0xf8] sm:$0xf]
    %v323 = vld [vmem:[#allocation7 + $0xfc] sm:$0xff]
    %v324 = vld [vmem:[#allocation7 + $0x104] sm:$0xf]
    %v325 = vld [vmem:[#allocation7 + $0x108] sm:$0xff]
    %v326 = vld [vmem:[#allocation7 + $0x110] sm:$0xf]
    %v327 = vld [vmem:[#allocation7 + $0x114] sm:$0xff]
    %v328 = vld [vmem:[#allocation7 + $0x11c] sm:$0xf]
    %v329 = vld [vmem:[#allocation7 + $0x120] sm:$0xff]
    %v330 = vld [vmem:[#allocation7 + $0x128] sm:$0xf]
    %v331 = vld [vmem:[#allocation7 + $0x12c] sm:$0xff]
    %v332 = vld [vmem:[#allocation7 + $0x134] sm:$0xf]
    %v333 = vld [vmem:[#allocation7 + $0x138] sm:$0xff]
    %v334 = vld [vmem:[#allocation7 + $0x140] sm:$0xf]
    %v335 = vld [vmem:[#allocation7 + $0x144] sm:$0xff]
    %v336 = vld [vmem:[#allocation7 + $0x14c] sm:$0xf]
    %v337 = vld [vmem:[#allocation7 + $0x150] sm:$0xff]
    %v338 = vld [vmem:[#allocation7 + $0x158] sm:$0xf]
    %v339 = vld [vmem:[#allocation7 + $0x15c] sm:$0xff]
    %v340 = vld [vmem:[#allocation7 + $0x164] sm:$0xf]
    %v341 = vld [vmem:[#allocation7 + $0x168] sm:$0xff]
    %v342 = vld [vmem:[#allocation7 + $0x170] sm:$0xf]
    %v343 = vld [vmem:[#allocation7 + $0x174] sm:$0xff]
    %v344 = vld [vmem:[#allocation7 + $0x17c] sm:$0xf]
    %v345 = vld [vmem:[#allocation7 + $0x180] sm:$0xff]
    %v346 = vld [vmem:[#allocation7 + $0x188] sm:$0xf]
    %v347 = vld [vmem:[#allocation7 + $0x18c] sm:$0xff]
    %v348 = vld [vmem:[#allocation7 + $0x194] sm:$0xf]
    %v349 = vld [vmem:[#allocation7 + $0x198] sm:$0xff]
    %v350 = vld [vmem:[#allocation7 + $0x1a0] sm:$0xf]
    %v351 = vld [vmem:[#allocation7 + $0x1a4] sm:$0xff]
    %v352 = vld [vmem:[#allocation7 + $0x1ac] sm:$0xf]
    %v353 = vld [vmem:[#allocation7 + $0x1b0] sm:$0xff]
    %v354 = vld [vmem:[#allocation7 + $0x1b8] sm:$0xf]
    %v355 = vld [vmem:[#allocation7 + $0x1bc] sm:$0xff]
    %v356 = vld [vmem:[#allocation7 + $0x1c4] sm:$0xf]
    %v357 = vld [vmem:[#allocation7 + $0x1c8] sm:$0xff]
    %v358 = vld [vmem:[#allocation7 + $0x1d0] sm:$0xf]
    %v359 = vld [vmem:[#allocation7 + $0x1d4] sm:$0xff]
    %v360 = vld [vmem:[#allocation7 + $0x1dc] sm:$0xf]
    %v361 = vld [vmem:[#allocation7 + $0x1e0] sm:$0xff]
    %v362 = vld [vmem:[#allocation7 + $0x1e8] sm:$0xf]
    %v363 = vld [vmem:[#allocation7 + $0x1ec] sm:$0xff]
    %v364 = vld [vmem:[#allocation7 + $0x1f4] sm:$0xf]
    %v365 = vld [vmem:[#allocation7 + $0x1f8] sm:$0xff]
    %v366 = vld [vmem:[#allocation7 + $0x200] sm:$0xf]
    %v367 = vld [vmem:[#allocation7 + $0x204] sm:$0xff]
    %v368 = vld [vmem:[#allocation7 + $0x20c] sm:$0xf]
    %v369 = vld [vmem:[#allocation7 + $0x210] sm:$0xff]
    %v370 = vld [vmem:[#allocation7 + $0x218] sm:$0xf]
    %v371 = vld [vmem:[#allocation7 + $0x21c] sm:$0xff]
    %v372 = vld [vmem:[#allocation7 + $0x224] sm:$0xf]
    %v373 = vld [vmem:[#allocation7 + $0x228] sm:$0xff]
    %v374 = vld [vmem:[#allocation7 + $0x230] sm:$0xf]
    %v375 = vld [vmem:[#allocation7 + $0x234] sm:$0xff]
    %v376 = vld [vmem:[#allocation7 + $0x23c] sm:$0xf]
    %v377 = vld [vmem:[#allocation7 + $0x240] sm:$0xff]
    %v378 = vld [vmem:[#allocation7 + $0x248] sm:$0xf]
    %v379 = vld [vmem:[#allocation7 + $0x24c] sm:$0xff]
    %v380 = vld [vmem:[#allocation7 + $0x254] sm:$0xf]
    %v381 = vld [vmem:[#allocation7 + $0x258] sm:$0xff]
    %v382 = vld [vmem:[#allocation7 + $0x260] sm:$0xf]
    %v383 = vld [vmem:[#allocation7 + $0x264] sm:$0xff]
    %v384 = vld [vmem:[#allocation7 + $0x26c] sm:$0xf]
    %v385 = vld [vmem:[#allocation7 + $0x270] sm:$0xff]
    %v386 = vld [vmem:[#allocation7 + $0x278] sm:$0xf]
    %v387 = vld [vmem:[#allocation7 + $0x27c] sm:$0xff]
    %v388 = vld [vmem:[#allocation7 + $0x284] sm:$0xf]
    %v389 = vld [vmem:[#allocation7 + $0x288] sm:$0xff]
    %v390 = vld [vmem:[#allocation7 + $0x290] sm:$0xf]
    %v391 = vld [vmem:[#allocation7 + $0x294] sm:$0xff]
    %v392 = vld [vmem:[#allocation7 + $0x29c] sm:$0xf]
    %v393 = vld [vmem:[#allocation7 + $0x2a0] sm:$0xff]
    %v394 = vld [vmem:[#allocation7 + $0x2a8] sm:$0xf]
    %v395 = vld [vmem:[#allocation7 + $0x2ac] sm:$0xff]
    %v396 = vld [vmem:[#allocation7 + $0x2b4] sm:$0xf]
    %v397 = vld [vmem:[#allocation7 + $0x2b8] sm:$0xff]
    %v398 = vld [vmem:[#allocation7 + $0x2c0] sm:$0xf]
    %v399 = vld [vmem:[#allocation7 + $0x2c4] sm:$0xff]
    %v400 = vld [vmem:[#allocation7 + $0x2cc] sm:$0xf]
    %v401 = vld [vmem:[#allocation7 + $0x2d0] sm:$0xff]
    %v402 = vld [vmem:[#allocation7 + $0x2d8] sm:$0xf]
    %v403 = vld [vmem:[#allocation7 + $0x2dc] sm:$0xff]
    %v404 = vld [vmem:[#allocation7 + $0x2e4] sm:$0xf]
    %v405 = vld [vmem:[#allocation7 + $0x2e8] sm:$0xff]
    %v406 = vld [vmem:[#allocation7 + $0x2f0] sm:$0xf]
    %v407 = vld [vmem:[#allocation7 + $0x2f4] sm:$0xff]
    %v408 = vld [vmem:[#allocation7 + $0x2fc] sm:$0xf]
    %v409 = vld [vmem:[#allocation8] sm:$0x7]
    %v411 = vperm.slane %v409, 0
    %v412 = vperm.slane %v409, 1
    %v413 = vperm.slane %v409, 2
    %v545 = vunpack.c.l.b16 %v281
    %v546 = vunpack.c.h.b16 %v281
    %v547 = vunpack.c.l.b16 %v282
    %v548 = vunpack.c.l.b16 %v283
    %v549 = vunpack.c.h.b16 %v283
    %v550 = vunpack.c.l.b16 %v284
    %v551 = vunpack.c.l.b16 %v285
    %v552 = vunpack.c.h.b16 %v285
    %v553 = vunpack.c.l.b16 %v286
    %v554 = vunpack.c.l.b16 %v287
    %v555 = vunpack.c.h.b16 %v287
    %v556 = vunpack.c.l.b16 %v288
    %v557 = vunpack.c.l.b16 %v289
    %v558 = vunpack.c.h.b16 %v289
    %v559 = vunpack.c.l.b16 %v290
    %v560 = vunpack.c.l.b16 %v291
    %v561 = vunpack.c.h.b16 %v291
    %v562 = vunpack.c.l.b16 %v292
    %v563 = vunpack.c.l.b16 %v293
    %v564 = vunpack.c.h.b16 %v293
    %v565 = vunpack.c.l.b16 %v294
    %v566 = vunpack.c.l.b16 %v295
    %v567 = vunpack.c.h.b16 %v295
    %v568 = vunpack.c.l.b16 %v296
    %v569 = vunpack.c.l.b16 %v297
    %v570 = vunpack.c.h.b16 %v297
    %v571 = vunpack.c.l.b16 %v298
    %v572 = vunpack.c.l.b16 %v299
    %v573 = vunpack.c.h.b16 %v299
    %v574 = vunpack.c.l.b16 %v300
    %v575 = vunpack.c.l.b16 %v301
    %v576 = vunpack.c.h.b16 %v301
    %v577 = vunpack.c.l.b16 %v302
    %v578 = vunpack.c.l.b16 %v303
    %v579 = vunpack.c.h.b16 %v303
    %v580 = vunpack.c.l.b16 %v304
    %v581 = vunpack.c.l.b16 %v305
    %v582 = vunpack.c.h.b16 %v305
    %v583 = vunpack.c.l.b16 %v306
    %v584 = vunpack.c.l.b16 %v307
    %v585 = vunpack.c.h.b16 %v307
    %v586 = vunpack.c.l.b16 %v308
    %v587 = vunpack.c.l.b16 %v309
    %v588 = vunpack.c.h.b16 %v309
    %v589 = vunpack.c.l.b16 %v310
    %v590 = vunpack.c.l.b16 %v311
    %v591 = vunpack.c.h.b16 %v311
    %v592 = vunpack.c.l.b16 %v312
    %v593 = vunpack.c.l.b16 %v313
    %v594 = vunpack.c.h.b16 %v313
    %v595 = vunpack.c.l.b16 %v314
    %v596 = vunpack.c.l.b16 %v315
    %v597 = vunpack.c.h.b16 %v315
    %v598 = vunpack.c.l.b16 %v316
    %v599 = vunpack.c.l.b16 %v317
    %v600 = vunpack.c.h.b16 %v317
    %v601 = vunpack.c.l.b16 %v318
    %v602 = vunpack.c.l.b16 %v319
    %v603 = vunpack.c.h.b16 %v319
    %v604 = vunpack.c.l.b16 %v320
    %v605 = vunpack.c.l.b16 %v321
    %v606 = vunpack.c.h.b16 %v321
    %v607 = vunpack.c.l.b16 %v322
    %v608 = vunpack.c.l.b16 %v323
    %v609 = vunpack.c.h.b16 %v323
    %v610 = vunpack.c.l.b16 %v324
    %v611 = vunpack.c.l.b16 %v325
    %v612 = vunpack.c.h.b16 %v325
    %v613 = vunpack.c.l.b16 %v326
    %v614 = vunpack.c.l.b16 %v327
    %v615 = vunpack.c.h.b16 %v327
    %v616 = vunpack.c.l.b16 %v328
    %v617 = vunpack.c.l.b16 %v329
    %v618 = vunpack.c.h.b16 %v329
    %v619 = vunpack.c.l.b16 %v330
    %v620 = vunpack.c.l.b16 %v331
    %v621 = vunpack.c.h.b16 %v331
    %v622 = vunpack.c.l.b16 %v332
    %v623 = vunpack.c.l.b16 %v333
    %v624 = vunpack.c.h.b16 %v333
    %v625 = vunpack.c.l.b16 %v334
    %v626 = vunpack.c.l.b16 %v335
    %v627 = vunpack.c.h.b16 %v335
    %v628 = vunpack.c.l.b16 %v336
    %v629 = vunpack.c.l.b16 %v337
    %v630 = vunpack.c.h.b16 %v337
    %v631 = vunpack.c.l.b16 %v338
    %v632 = vunpack.c.l.b16 %v339
    %v633 = vunpack.c.h.b16 %v339
    %v634 = vunpack.c.l.b16 %v340
    %v635 = vunpack.c.l.b16 %v341
    %v636 = vunpack.c.h.b16 %v341
    %v637 = vunpack.c.l.b16 %v342
    %v638 = vunpack.c.l.b16 %v343
    %v639 = vunpack.c.h.b16 %v343
    %v640 = vunpack.c.l.b16 %v344
    %v641 = vunpack.c.l.b16 %v345
    %v642 = vunpack.c.h.b16 %v345
    %v643 = vunpack.c.l.b16 %v346
    %v644 = vunpack.c.l.b16 %v347
    %v645 = vunpack.c.h.b16 %v347
    %v646 = vunpack.c.l.b16 %v348
    %v647 = vunpack.c.l.b16 %v349
    %v648 = vunpack.c.h.b16 %v349
    %v649 = vunpack.c.l.b16 %v350
    %v650 = vunpack.c.l.b16 %v351
    %v651 = vunpack.c.h.b16 %v351
    %v652 = vunpack.c.l.b16 %v352
    %v653 = vunpack.c.l.b16 %v353
    %v654 = vunpack.c.h.b16 %v353
    %v655 = vunpack.c.l.b16 %v354
    %v656 = vunpack.c.l.b16 %v355
    %v657 = vunpack.c.h.b16 %v355
    %v658 = vunpack.c.l.b16 %v356
    %v659 = vunpack.c.l.b16 %v357
    %v660 = vunpack.c.h.b16 %v357
    %v661 = vunpack.c.l.b16 %v358
    %v662 = vunpack.c.l.b16 %v359
    %v663 = vunpack.c.h.b16 %v359
    %v664 = vunpack.c.l.b16 %v360
    %v665 = vunpack.c.l.b16 %v361
    %v666 = vunpack.c.h.b16 %v361
    %v667 = vunpack.c.l.b16 %v362
    %v668 = vunpack.c.l.b16 %v363
    %v669 = vunpack.c.h.b16 %v363
    %v670 = vunpack.c.l.b16 %v364
    %v671 = vunpack.c.l.b16 %v365
    %v672 = vunpack.c.h.b16 %v365
    %v673 = vunpack.c.l.b16 %v366
    %v674 = vunpack.c.l.b16 %v367
    %v675 = vunpack.c.h.b16 %v367
    %v676 = vunpack.c.l.b16 %v368
    %v677 = vunpack.c.l.b16 %v369
    %v678 = vunpack.c.h.b16 %v369
    %v679 = vunpack.c.l.b16 %v370
    %v680 = vunpack.c.l.b16 %v371
    %v681 = vunpack.c.h.b16 %v371
    %v682 = vunpack.c.l.b16 %v372
    %v683 = vunpack.c.l.b16 %v373
    %v684 = vunpack.c.h.b16 %v373
    %v685 = vunpack.c.l.b16 %v374
    %v686 = vunpack.c.l.b16 %v375
    %v687 = vunpack.c.h.b16 %v375
    %v688 = vunpack.c.l.b16 %v376
    %v689 = vunpack.c.l.b16 %v377
    %v690 = vunpack.c.h.b16 %v377
    %v691 = vunpack.c.l.b16 %v378
    %v692 = vunpack.c.l.b16 %v379
    %v693 = vunpack.c.h.b16 %v379
    %v694 = vunpack.c.l.b16 %v380
    %v695 = vunpack.c.l.b16 %v381
    %v696 = vunpack.c.h.b16 %v381
    %v697 = vunpack.c.l.b16 %v382
    %v698 = vunpack.c.l.b16 %v383
    %v699 = vunpack.c.h.b16 %v383
    %v700 = vunpack.c.l.b16 %v384
    %v701 = vunpack.c.l.b16 %v385
    %v702 = vunpack.c.h.b16 %v385
    %v703 = vunpack.c.l.b16 %v386
    %v704 = vunpack.c.l.b16 %v387
    %v705 = vunpack.c.h.b16 %v387
    %v706 = vunpack.c.l.b16 %v388
    %v707 = vunpack.c.l.b16 %v389
    %v708 = vunpack.c.h.b16 %v389
    %v709 = vunpack.c.l.b16 %v390
    %v710 = vunpack.c.l.b16 %v391
    %v711 = vunpack.c.h.b16 %v391
    %v712 = vunpack.c.l.b16 %v392
    %v713 = vunpack.c.l.b16 %v393
    %v714 = vunpack.c.h.b16 %v393
    %v715 = vunpack.c.l.b16 %v394
    %v716 = vunpack.c.l.b16 %v395
    %v717 = vunpack.c.h.b16 %v395
    %v718 = vunpack.c.l.b16 %v396
    %v719 = vunpack.c.l.b16 %v397
    %v720 = vunpack.c.h.b16 %v397
    %v721 = vunpack.c.l.b16 %v398
    %v722 = vunpack.c.l.b16 %v399
    %v723 = vunpack.c.h.b16 %v399
    %v724 = vunpack.c.l.b16 %v400
    %v725 = vunpack.c.l.b16 %v401
    %v726 = vunpack.c.h.b16 %v401
    %v727 = vunpack.c.l.b16 %v402
    %v728 = vunpack.c.l.b16 %v403
    %v729 = vunpack.c.h.b16 %v403
    %v730 = vunpack.c.l.b16 %v404
    %v731 = vunpack.c.l.b16 %v405
    %v732 = vunpack.c.h.b16 %v405
    %v733 = vunpack.c.l.b16 %v406
    %v734 = vunpack.c.l.b16 %v407
    %v735 = vunpack.c.h.b16 %v407
    %v736 = vunpack.c.l.b16 %v408
    %v737 = vpack.c.b16 %v548, %v545
    %v738 = vpack.c.b16 %v549, %v546
    %v739 = vpack.c.b16 %v550, %v547
    %v740 = vpack.c.b16 %v554, %v551
    %v741 = vpack.c.b16 %v555, %v552
    %v742 = vpack.c.b16 %v556, %v553
    %v743 = vpack.c.b16 %v560, %v557
    %v744 = vpack.c.b16 %v561, %v558
    %v745 = vpack.c.b16 %v562, %v559
    %v746 = vpack.c.b16 %v566, %v563
    %v747 = vpack.c.b16 %v567, %v564
    %v748 = vpack.c.b16 %v568, %v565
    %v749 = vpack.c.b16 %v572, %v569
    %v750 = vpack.c.b16 %v573, %v570
    %v751 = vpack.c.b16 %v574, %v571
    %v752 = vpack.c.b16 %v578, %v575
    %v753 = vpack.c.b16 %v579, %v576
    %v754 = vpack.c.b16 %v580, %v577
    %v755 = vpack.c.b16 %v584, %v581
    %v756 = vpack.c.b16 %v585, %v582
    %v757 = vpack.c.b16 %v586, %v583
    %v758 = vpack.c.b16 %v590, %v587
    %v759 = vpack.c.b16 %v591, %v588
    %v760 = vpack.c.b16 %v592, %v589
    %v761 = vpack.c.b16 %v596, %v593
    %v762 = vpack.c.b16 %v597, %v594
    %v763 = vpack.c.b16 %v598, %v595
    %v764 = vpack.c.b16 %v602, %v599
    %v765 = vpack.c.b16 %v603, %v600
    %v766 = vpack.c.b16 %v604, %v601
    %v767 = vpack.c.b16 %v608, %v605
    %v768 = vpack.c.b16 %v609, %v606
    %v769 = vpack.c.b16 %v610, %v607
    %v770 = vpack.c.b16 %v614, %v611
    %v771 = vpack.c.b16 %v615, %v612
    %v772 = vpack.c.b16 %v616, %v613
    %v773 = vpack.c.b16 %v620, %v617
    %v774 = vpack.c.b16 %v621, %v618
    %v775 = vpack.c.b16 %v622, %v619
    %v776 = vpack.c.b16 %v626, %v623
    %v777 = vpack.c.b16 %v627, %v624
    %v778 = vpack.c.b16 %v628, %v625
    %v779 = vpack.c.b16 %v632, %v629
    %v780 = vpack.c.b16 %v633, %v630
    %v781 = vpack.c.b16 %v634, %v631
    %v782 = vpack.c.b16 %v638, %v635
    %v783 = vpack.c.b16 %v639, %v636
    %v784 = vpack.c.b16 %v640, %v637
    %v785 = vpack.c.b16 %v644, %v641
    %v786 = vpack.c.b16 %v645, %v642
    %v787 = vpack.c.b16 %v646, %v643
    %v788 = vpack.c.b16 %v650, %v647
    %v789 = vpack.c.b16 %v651, %v648
    %v790 = vpack.c.b16 %v652, %v649
    %v791 = vpack.c.b16 %v656, %v653
    %v792 = vpack.c.b16 %v657, %v654
    %v793 = vpack.c.b16 %v658, %v655
    %v794 = vpack.c.b16 %v662, %v659
    %v795 = vpack.c.b16 %v663, %v660
    %v796 = vpack.c.b16 %v664, %v661
    %v797 = vpack.c.b16 %v668, %v665
    %v798 = vpack.c.b16 %v669, %v666
    %v799 = vpack.c.b16 %v670, %v667
    %v800 = vpack.c.b16 %v674, %v671
    %v801 = vpack.c.b16 %v675, %v672
    %v802 = vpack.c.b16 %v676, %v673
    %v803 = vpack.c.b16 %v680, %v677
    %v804 = vpack.c.b16 %v681, %v678
    %v805 = vpack.c.b16 %v682, %v679
    %v806 = vpack.c.b16 %v686, %v683
    %v807 = vpack.c.b16 %v687, %v684
    %v808 = vpack.c.b16 %v688, %v685
    %v809 = vpack.c.b16 %v692, %v689
    %v810 = vpack.c.b16 %v693, %v690
    %v811 = vpack.c.b16 %v694, %v691
    %v812 = vpack.c.b16 %v698, %v695
    %v813 = vpack.c.b16 %v699, %v696
    %v814 = vpack.c.b16 %v700, %v697
    %v815 = vpack.c.b16 %v704, %v701
    %v816 = vpack.c.b16 %v705, %v702
    %v817 = vpack.c.b16 %v706, %v703
    %v818 = vpack.c.b16 %v710, %v707
    %v819 = vpack.c.b16 %v711, %v708
    %v820 = vpack.c.b16 %v712, %v709
    %v821 = vpack.c.b16 %v716, %v713
    %v822 = vpack.c.b16 %v717, %v714
    %v823 = vpack.c.b16 %v718, %v715
    %v824 = vpack.c.b16 %v722, %v719
    %v825 = vpack.c.b16 %v723, %v720
    %v826 = vpack.c.b16 %v724, %v721
    %v827 = vpack.c.b16 %v728, %v725
    %v828 = vpack.c.b16 %v729, %v726
    %v829 = vpack.c.b16 %v730, %v727
    %v830 = vpack.c.b16 %v734, %v731
    %v831 = vpack.c.b16 %v735, %v732
    %v832 = vpack.c.b16 %v736, %v733
    %929 = vmatpush.bf16.msra.mxu0 %v758
    %930 = vmatpush.bf16.msra.mxu0 %v755
    %931 = vmatpush.bf16.msra.mxu0 %v752
    %932 = vmatpush.bf16.msra.mxu0 %v749
    %933 = vmatpush.bf16.msra.mxu0 %v746
    %934 = vmatpush.bf16.msra.mxu0 %v743
    %935 = vmatpush.bf16.msra.mxu0 %v740
    %936 = vmatpush.bf16.msra.mxu0 %v737
    %937 = vmatmul.bf16.gmra.mxu0 %v277
    %v938 = vpop.f32.mrf.mxu0
    %v939 = vadd.f32 %v411, %v938
    %v940 = vpop.f32.mrf.mxu0
    %941 = vdwg.mxu0
    %942 = vmatpush.bf16.msra.mxu0 %v782
    %943 = vmatpush.bf16.msra.mxu0 %v779
    %944 = vmatpush.bf16.msra.mxu0 %v776
    %945 = vmatpush.bf16.msra.mxu0 %v773
    %946 = vmatpush.bf16.msra.mxu0 %v770
    %947 = vmatpush.bf16.msra.mxu0 %v767
    %948 = vmatpush.bf16.msra.mxu0 %v764
    %949 = vmatpush.bf16.msra.mxu0 %v761
    %950 = vmatmul.bf16.gmra.mxu0 %v278
    %v951 = vpop.f32.mrf.mxu0
    %v952 = vadd.f32 %v939, %v951
    %v953 = vpop.f32.mrf.mxu0
    %954 = vdwg.mxu0
    %955 = vmatpush.bf16.msra.mxu0 %v806
    %956 = vmatpush.bf16.msra.mxu0 %v803
    %957 = vmatpush.bf16.msra.mxu0 %v800
    %958 = vmatpush.bf16.msra.mxu0 %v797
    %959 = vmatpush.bf16.msra.mxu0 %v794
    %960 = vmatpush.bf16.msra.mxu0 %v791
    %961 = vmatpush.bf16.msra.mxu0 %v788
    %962 = vmatpush.bf16.msra.mxu0 %v785
    %963 = vmatmul.bf16.gmra.mxu0 %v279
    %v964 = vpop.f32.mrf.mxu0
    %v965 = vadd.f32 %v952, %v964
    %v966 = vpop.f32.mrf.mxu0
    %967 = vdwg.mxu0
    %968 = vmatpush.bf16.msra.mxu0 %v830
    %969 = vmatpush.bf16.msra.mxu0 %v827
    %970 = vmatpush.bf16.msra.mxu0 %v824
    %971 = vmatpush.bf16.msra.mxu0 %v821
    %972 = vmatpush.bf16.msra.mxu0 %v818
    %973 = vmatpush.bf16.msra.mxu0 %v815
    %974 = vmatpush.bf16.msra.mxu0 %v812
    %975 = vmatpush.bf16.msra.mxu0 %v809
    %976 = vmatmul.bf16.gmra.mxu0 %v280
    %v977 = vpop.f32.mrf.mxu0
    %v978 = vadd.f32 %v965, %v977
    %v979 = vpop.f32.mrf.mxu0
    %980 = vdwg.mxu0
    %981 = vmatpush.bf16.msra.mxu0 %v759
    %982 = vmatpush.bf16.msra.mxu0 %v756
    %983 = vmatpush.bf16.msra.mxu0 %v753
    %984 = vmatpush.bf16.msra.mxu0 %v750
    %985 = vmatpush.bf16.msra.mxu0 %v747
    %986 = vmatpush.bf16.msra.mxu0 %v744
    %987 = vmatpush.bf16.msra.mxu0 %v741
    %988 = vmatpush.bf16.msra.mxu0 %v738
    %989 = vmatmul.bf16.gmra.mxu0 %v277
    %v990 = vpop.f32.mrf.mxu0
    %v991 = vadd.f32 %v412, %v990
    %v992 = vpop.f32.mrf.mxu0
    %993 = vdwg.mxu0
    %994 = vmatpush.bf16.msra.mxu0 %v783
    %995 = vmatpush.bf16.msra.mxu0 %v780
    %996 = vmatpush.bf16.msra.mxu0 %v777
    %997 = vmatpush.bf16.msra.mxu0 %v774
    %998 = vmatpush.bf16.msra.mxu0 %v771
    %999 = vmatpush.bf16.msra.mxu0 %v768
    %1000 = vmatpush.bf16.msra.mxu0 %v765
    %1001 = vmatpush.bf16.msra.mxu0 %v762
    %1002 = vmatmul.bf16.gmra.mxu0 %v278
    %v1003 = vpop.f32.mrf.mxu0
    %v1004 = vadd.f32 %v991, %v1003
    %v1005 = vpop.f32.mrf.mxu0
    %1006 = vdwg.mxu0
    %1007 = vmatpush.bf16.msra.mxu0 %v807
    %1008 = vmatpush.bf16.msra.mxu0 %v804
    %1009 = vmatpush.bf16.msra.mxu0 %v801
    %1010 = vmatpush.bf16.msra.mxu0 %v798
    %1011 = vmatpush.bf16.msra.mxu0 %v795
    %1012 = vmatpush.bf16.msra.mxu0 %v792
    %1013 = vmatpush.bf16.msra.mxu0 %v789
    %1014 = vmatpush.bf16.msra.mxu0 %v786
    %1015 = vmatmul.bf16.gmra.mxu0 %v279
    %v1016 = vpop.f32.mrf.mxu0
    %v1017 = vadd.f32 %v1004, %v1016
    %v1018 = vpop.f32.mrf.mxu0
    %1019 = vdwg.mxu0
    %1020 = vmatpush.bf16.msra.mxu0 %v831
    %1021 = vmatpush.bf16.msra.mxu0 %v828
    %1022 = vmatpush.bf16.msra.mxu0 %v825
    %1023 = vmatpush.bf16.msra.mxu0 %v822
    %1024 = vmatpush.bf16.msra.mxu0 %v819
    %1025 = vmatpush.bf16.msra.mxu0 %v816
    %1026 = vmatpush.bf16.msra.mxu0 %v813
    %1027 = vmatpush.bf16.msra.mxu0 %v810
    %1028 = vmatmul.bf16.gmra.mxu0 %v280
    %v1029 = vpop.f32.mrf.mxu0
    %v1030 = vadd.f32 %v1017, %v1029
    %v1031 = vpop.f32.mrf.mxu0
    %1032 = vdwg.mxu0
    %1033 = vmatpush.bf16.msra.mxu0 %v760
    %1034 = vmatpush.bf16.msra.mxu0 %v757
    %1035 = vmatpush.bf16.msra.mxu0 %v754
    %1036 = vmatpush.bf16.msra.mxu0 %v751
    %1037 = vmatpush.bf16.msra.mxu0 %v748
    %1038 = vmatpush.bf16.msra.mxu0 %v745
    %1039 = vmatpush.bf16.msra.mxu0 %v742
    %1040 = vmatpush.bf16.msra.mxu0 %v739
    %1041 = vmatmul.bf16.gmra.mxu0 %v277
    %v1042 = vpop.f32.mrf.mxu0
    %v1043 = vadd.f32 %v413, %v1042
    %v1044 = vpop.f32.mrf.mxu0
    %1045 = vdwg.mxu0
    %1046 = vmatpush.bf16.msra.mxu0 %v784
    %1047 = vmatpush.bf16.msra.mxu0 %v781
    %1048 = vmatpush.bf16.msra.mxu0 %v778
    %1049 = vmatpush.bf16.msra.mxu0 %v775
    %1050 = vmatpush.bf16.msra.mxu0 %v772
    %1051 = vmatpush.bf16.msra.mxu0 %v769
    %1052 = vmatpush.bf16.msra.mxu0 %v766
    %1053 = vmatpush.bf16.msra.mxu0 %v763
    %1054 = vmatmul.bf16.gmra.mxu0 %v278
    %v1055 = vpop.f32.mrf.mxu0
    %v1056 = vadd.f32 %v1043, %v1055
    %v1057 = vpop.f32.mrf.mxu0
    %1058 = vdwg.mxu0
    %1059 = vmatpush.bf16.msra.mxu0 %v808
    %1060 = vmatpush.bf16.msra.mxu0 %v805
    %1061 = vmatpush.bf16.msra.mxu0 %v802
    %1062 = vmatpush.bf16.msra.mxu0 %v799
    %1063 = vmatpush.bf16.msra.mxu0 %v796
    %1064 = vmatpush.bf16.msra.mxu0 %v793
    %1065 = vmatpush.bf16.msra.mxu0 %v790
    %1066 = vmatpush.bf16.msra.mxu0 %v787
    %1067 = vmatmul.bf16.gmra.mxu0 %v279
    %v1068 = vpop.f32.mrf.mxu0
    %v1069 = vadd.f32 %v1056, %v1068
    %v1070 = vpop.f32.mrf.mxu0
    %1071 = vdwg.mxu0
    %1072 = vmatpush.bf16.msra.mxu0 %v832
    %1073 = vmatpush.bf16.msra.mxu0 %v829
    %1074 = vmatpush.bf16.msra.mxu0 %v826
    %1075 = vmatpush.bf16.msra.mxu0 %v823
    %1076 = vmatpush.bf16.msra.mxu0 %v820
    %1077 = vmatpush.bf16.msra.mxu0 %v817
    %1078 = vmatpush.bf16.msra.mxu0 %v814
    %1079 = vmatpush.bf16.msra.mxu0 %v811
    %1080 = vmatmul.bf16.gmra.mxu0 %v280
    %v1081 = vpop.f32.mrf.mxu0
    %v1082 = vadd.f32 %v1069, %v1081
    %v1083 = vpop.f32.mrf.mxu0
    %1084 = vdwg.mxu0
    %v1085 = vmax.f32 %v978, 0.0
    %v1086 = vmax.f32 %v1030, 0.0
    %v1087 = vmax.f32 %v1082, 0.0
    %v1088 = vld [vmem:[%s7] sm:$0x7]
    %v1090 = vperm.slane %v1088, 0
    %v1091 = vperm.slane %v1088, 1
    %v1092 = vperm.slane %v1088, 2
    %v1096 = vmul.f32 %v1085, %v1090
    %v1097 = vmul.f32 %v1086, %v1091
    %v1098 = vmul.f32 %v1087, %v1092
    %v1099 = vadd.f32 %v1096, %v1097
    %v1100 = vadd.f32 %v1099, %v1098
    %1101 = vadd.xlane.f32.xlu0 %v1100
    %v1102 = vpop.xlane.xlu0 %1101
    %v1103 = vld [vmem:[#allocation2] sm:$0x1]
    %v1105 = vperm.slane %v1103, 0
    %v1107 = vadd.f32 %v1102, %v1105
    %vm1108 = vcmask 7168
    %1109 = vst.msk [vmem:[%s9] sm:$0xff] %vm1108, %v1107
    // Predicated region
    $region54: #{critic_forward.1} parent=1 // pred_check
      _
    $region55: #{critic_forward.1} parent=1 // pred_check_branch
      %1111 = sbr.rel (0) target = $region57
    $region56: #{critic_forward.1} parent=1 // pred_region
      _
    $region57: #{critic_forward.1} parent=1 // pred_fallthru
      _
    // Predicated region
    $region58: #{critic_forward.1} parent=1 // pred_check
      _
    $region59: #{critic_forward.1} parent=1 // pred_check_branch
      %1113 = sbr.rel (0) target = $region61
    $region60: #{critic_forward.1} parent=1 // pred_region
      _
    $region61: #{critic_forward.1} parent=1 // pred_fallthru
      _
    %1114 = vsyncpa [#allocation4], 1
    %1115 = vsyncpa [#allocation6], 1
    %1116 = vsyncpa [#allocation9], 1

</llo_original>
